<compile_context>
chip_gen: v5e
topology: v5e:2x2
jax: 0.10.0
libtpu: 0.0.40
codegen_flags: <defaults>
</compile_context>

<pallas_src>
import jax
import jax.numpy as jnp
from jax.experimental import pallas as pl
from jax.experimental.pallas import tpu as pltpu


def _make_focal_kernel(*, K, HW, T_hw, gamma, ignore_index, has_weight):
    mask_ignore = 0 <= ignore_index < K

    def kernel(x_ref, tgt_ref, *rest):
        if has_weight:
            w_ref, lsum_ref, cnt_ref = rest
        else:
            lsum_ref, cnt_ref = rest

        j = pl.program_id(1)

        x = x_ref[0].astype(jnp.float32)          # (K, T_hw), classes on sublanes
        tgt = tgt_ref[0]                          # (1, T_hw) int32

        classes = jax.lax.broadcasted_iota(jnp.int32, (K, T_hw), 0)
        onehot = (classes == tgt).astype(jnp.float32)   # (K, T_hw)

        # stable log-softmax along the class (sublane) axis, gathered at target:
        #   logpt = x[t] - max - log(sum(exp(x - max)))
        m = jnp.max(x, axis=0, keepdims=True)                          # (1, T)
        lse = jnp.log(jnp.sum(jnp.exp(x - m), axis=0, keepdims=True))  # (1, T)
        xt = jnp.sum(onehot * x, axis=0, keepdims=True)                # x[target]
        logpt = xt - m - lse                                           # (1, T)
        pt = jnp.exp(logpt)

        if has_weight:
            wt = jnp.sum(onehot * w_ref[...], axis=0, keepdims=True)   # weight[target]
            wlogpt = wt * logpt
        else:
            wlogpt = logpt

        one_minus = 1.0 - pt
        if gamma == 2.0:
            mod = one_minus * one_minus           # default path: no general pow
        elif gamma == 1.0:
            mod = one_minus
        elif gamma == 0.0:
            mod = jnp.ones_like(one_minus)
        else:
            mod = jnp.power(jnp.maximum(one_minus, 0.0), gamma)

        loss = -mod * wlogpt                                           # (1, T)

        # validity: in-bounds pixel (ragged tail of the lane tiling) and, if
        # ignore_index is an actual class index, target != ignore_index.
        col = j * T_hw + jax.lax.broadcasted_iota(jnp.int32, (1, T_hw), 1)
        valid = col < HW
        if mask_ignore:
            valid = valid & (tgt != ignore_index)

        loss_m = jnp.where(valid, loss, 0.0)
        cnt_m = valid.astype(jnp.float32)

        # lane-dense per-tile partials: (1, T_hw) -> (1, 128)
        if T_hw % 128 == 0:
            part_l = jnp.sum(loss_m.reshape(T_hw // 128, 128), axis=0)
            part_c = jnp.sum(cnt_m.reshape(T_hw // 128, 128), axis=0)
        else:
            lane = jax.lax.broadcasted_iota(jnp.int32, (1, 128), 1)
            part_l = jnp.where(lane == 0, jnp.sum(loss_m), 0.0)
            part_c = jnp.where(lane == 0, jnp.sum(cnt_m), 0.0)

        lsum_ref[...] = part_l.reshape(1, 1, 1, 128)
        cnt_ref[...] = part_c.reshape(1, 1, 1, 128)

    return kernel


def focal_loss(x, target, weight=None, ignore_index=-100, reduction="mean",
               gamma=2.0):
    """x: [N, K, H, W] logits (any float dtype), target: [N, H, W] int classes."""
    if reduction not in ("mean", "sum"):
        # TODO(synk): reduction='none' needs a per-pixel output spec; not wired here.
        raise NotImplementedError("reduction='none' not implemented in this kernel")

    N, K, H, W = x.shape
    HW = H * W

    # contiguous reshapes only: no HBM transpose / pad / dtype round-trips.
    x3 = x.reshape(N, K, HW)
    t3 = target.reshape(N, 1, HW).astype(jnp.int32)

    has_weight = weight is not None
    if has_weight:
        w2 = jnp.asarray(weight, jnp.float32).reshape(K, 1)

    # lane-tile width: multiple of 128, sized to a conservative VMEM budget
    # (double-buffered logits <= ~8 MiB -> safe on v5e's 16 MiB and v7x's 32 MiB
    # scoped defaults; limit also set explicitly below).
    itemsize = jnp.dtype(x.dtype).itemsize
    budget_cols = (8 * 1024 * 1024) // (2 * K * itemsize)
    budget_cols = max(128, (budget_cols // 128) * 128)
    if HW >= 128:
        T_hw = min(budget_cols, 16384, (HW // 128) * 128)
    else:
        T_hw = HW                                  # block == full lane dim
    grid_hw = pl.cdiv(HW, T_hw)
    grid = (N, grid_hw)

    kernel = _make_focal_kernel(K=K, HW=HW, T_hw=T_hw, gamma=float(gamma),
                                ignore_index=int(ignore_index),
                                has_weight=has_weight)

    in_specs = [
        pl.BlockSpec((1, K, T_hw), lambda n, j: (n, 0, j)),   # logits tile
        pl.BlockSpec((1, 1, T_hw), lambda n, j: (n, 0, j)),   # target tile
    ]
    args = [x3, t3]
    if has_weight:
        in_specs.append(pl.BlockSpec((K, 1), lambda n, j: (0, 0)))  # class weights
        args.append(w2)

    part_shape = jax.ShapeDtypeStruct((N, grid_hw, 1, 128), jnp.float32)
    out_spec = pl.BlockSpec((1, 1, 1, 128), lambda n, j: (n, j, 0, 0))

    loss_part, cnt_part = pl.pallas_call(
        kernel,
        out_shape=(part_shape, part_shape),
        grid_spec=pltpu.PrefetchScalarGridSpec(
            num_scalar_prefetch=0,
            grid=grid,
            in_specs=in_specs,
            out_specs=[out_spec, out_spec],
        ),
        compiler_params=pltpu.CompilerParams(
            dimension_semantics=("parallel", "parallel"),
            vmem_limit_bytes=32 * 1024 * 1024,
        ),
    )(*args)

    total = jnp.sum(loss_part)
    if reduction == "sum":
        return total
    return total / jnp.sum(cnt_part)


def _focal_loss_ref(x, target, weight=None, ignore_index=-100,
                    reduction="mean", gamma=2.0):
    """Pure-JAX reference mirroring holocron's focal_loss."""
    N, K, H, W = x.shape
    x2 = jnp.transpose(x, (0, 2, 3, 1)).reshape(-1, K).astype(jnp.float32)
    t2 = target.reshape(-1).astype(jnp.int32)
    logp = jax.nn.log_softmax(x2, axis=-1)
    logpt = jnp.take_along_axis(logp, t2[:, None], axis=-1)[:, 0]
    pt = jnp.exp(logpt)
    if weight is not None:
        logpt = jnp.asarray(weight, jnp.float32)[t2] * logpt
    loss = -((1.0 - pt) ** gamma) * logpt
    valid = jnp.ones_like(loss, dtype=bool)
    if 0 <= ignore_index < K:
        valid = t2 != ignore_index
    if reduction == "sum":
        return jnp.sum(jnp.where(valid, loss, 0.0))
    return jnp.sum(jnp.where(valid, loss, 0.0)) / jnp.sum(valid.astype(jnp.float32))


if __name__ == "__main__":
    key = jax.random.PRNGKey(0)
    kx, kt = jax.random.split(key)

    N, K, H, W = 2, 4, 16, 16
    x = jax.random.normal(kx, (N, K, H, W), dtype=jnp.float32)
    target = jax.random.randint(kt, (N, H, W), 0, K, dtype=jnp.int32)

    # Default FocalLoss(gamma=2.0): weight=None, ignore_index=-100, 'mean'
    out = focal_loss(x, target)
    out = jax.block_until_ready(out)
    ref = _focal_loss_ref(x, target)
    assert jnp.allclose(out, ref, rtol=1e-5, atol=1e-5), (out, ref)

    # Weighted path + active ignore_index + 'sum' reduction
    w = [0.5, 1.0, 2.0, 1.5]
    out_w = focal_loss(x, target, weight=w, ignore_index=2, reduction="sum")
    out_w = jax.block_until_ready(out_w)
    ref_w = _focal_loss_ref(x, target, weight=w, ignore_index=2, reduction="sum")
    assert jnp.allclose(out_w, ref_w, rtol=1e-5, atol=1e-5), (out_w, ref_w)

    print("KERNEL_OK")
</pallas_src>

<mosaic_0001>
module attributes {stable_mosaic.version = 11 : i64} {
  func.func @kernel(%arg0: i32, %arg1: i32, %arg2: memref<1x4x256xf32, #tpu.memory_space<vmem>>, %arg3: memref<1x1x256xi32, #tpu.memory_space<vmem>>, %arg4: memref<1x1x1x128xf32, #tpu.memory_space<vmem>>, %arg5: memref<1x1x1x128xf32, #tpu.memory_space<vmem>>) attributes {dimension_semantics = [#tpu.dimension_semantics<parallel>, #tpu.dimension_semantics<parallel>], iteration_bounds = array<i64: 2, 1>, scalar_prefetch = 0 : i64, scratch_operands = 0 : i64, tpu.core_type = #tpu.core_type<tc>, window_params = [{transform_indices = @transform_0, window_bounds = array<i64: 1, 4, 256>}, {transform_indices = @transform_1, window_bounds = array<i64: 1, 1, 256>}, {transform_indices = @transform_2, window_bounds = array<i64: 1, 1, 1, 128>}, {transform_indices = @transform_3, window_bounds = array<i64: 1, 1, 1, 128>}]} {
    %c0 = arith.constant 0 : index
    %c0_0 = arith.constant 0 : index
    %c0_1 = arith.constant 0 : index
    %0 = vector.load %arg2[%c0, %c0_0, %c0_1] : memref<1x4x256xf32, #tpu.memory_space<vmem>>, vector<1x4x256xf32>
    %1 = vector.shape_cast %0 : vector<1x4x256xf32> to vector<4x256xf32>
    %c0_2 = arith.constant 0 : index
    %c0_3 = arith.constant 0 : index
    %c0_4 = arith.constant 0 : index
    %2 = vector.load %arg3[%c0_2, %c0_3, %c0_4] : memref<1x1x256xi32, #tpu.memory_space<vmem>>, vector<1x1x256xi32>
    %3 = vector.shape_cast %2 : vector<1x1x256xi32> to vector<1x256xi32>
    %4 = tpu.iota {dimensions = array<i32: 0>} : vector<4x256xi32>
    %5 = vector.broadcast %3 : vector<1x256xi32> to vector<4x256xi32>
    %6 = arith.cmpi eq, %4, %5 : vector<4x256xi32>
    %7 = arith.extui %6 : vector<4x256xi1> to vector<4x256xi32>
    %8 = arith.sitofp %7 : vector<4x256xi32> to vector<4x256xf32>
    %cst = arith.constant dense<0xFF800000> : vector<256xf32>
    %9 = vector.multi_reduction <maximumf>, %1, %cst [0] : vector<4x256xf32> to vector<256xf32>
    %10 = vector.shape_cast %9 : vector<256xf32> to vector<1x256xf32>
    %11 = vector.broadcast %10 : vector<1x256xf32> to vector<4x256xf32>
    %12 = arith.subf %1, %11 : vector<4x256xf32>
    %13 = math.exp %12 : vector<4x256xf32>
    %cst_5 = arith.constant dense<0.000000e+00> : vector<256xf32>
    %14 = vector.multi_reduction <add>, %13, %cst_5 [0] : vector<4x256xf32> to vector<256xf32>
    %15 = vector.shape_cast %14 : vector<256xf32> to vector<1x256xf32>
    %16 = math.log %15 : vector<1x256xf32>
    %17 = arith.mulf %8, %1 : vector<4x256xf32>
    %cst_6 = arith.constant dense<0.000000e+00> : vector<256xf32>
    %18 = vector.multi_reduction <add>, %17, %cst_6 [0] : vector<4x256xf32> to vector<256xf32>
    %19 = vector.shape_cast %18 : vector<256xf32> to vector<1x256xf32>
    %20 = arith.subf %19, %10 : vector<1x256xf32>
    %21 = arith.subf %20, %16 : vector<1x256xf32>
    %22 = math.exp %21 : vector<1x256xf32>
    %cst_7 = arith.constant 1.000000e+00 : f32
    %23 = vector.broadcast %cst_7 : f32 to vector<1x256xf32>
    %24 = arith.subf %23, %22 : vector<1x256xf32>
    %25 = arith.mulf %24, %24 : vector<1x256xf32>
    %cst_8 = arith.constant 0.000000e+00 : f32
    %26 = vector.broadcast %cst_8 : f32 to vector<1x256xf32>
    %27 = arith.subf %26, %25 : vector<1x256xf32>
    %28 = arith.mulf %27, %21 : vector<1x256xf32>
    %c256_i32 = arith.constant 256 : i32
    %29 = arith.muli %arg1, %c256_i32 : i32
    %30 = tpu.iota {dimensions = array<i32: 1>} : vector<1x256xi32>
    %31 = vector.broadcast %29 : i32 to vector<1x256xi32>
    %32 = arith.addi %31, %30 : vector<1x256xi32>
    %c256_i32_9 = arith.constant 256 : i32
    %33 = vector.broadcast %c256_i32_9 : i32 to vector<1x256xi32>
    %34 = arith.cmpi slt, %32, %33 : vector<1x256xi32>
    %cst_10 = arith.constant 0.000000e+00 : f32
    %35 = vector.broadcast %cst_10 : f32 to vector<1x256xf32>
    %36 = arith.select %34, %28, %35 : vector<1x256xi1>, vector<1x256xf32>
    %37 = arith.extui %34 : vector<1x256xi1> to vector<1x256xi32>
    %38 = arith.sitofp %37 : vector<1x256xi32> to vector<1x256xf32>
    %39 = vector.shape_cast %36 : vector<1x256xf32> to vector<2x128xf32>
    %cst_11 = arith.constant dense<0.000000e+00> : vector<128xf32>
    %40 = vector.multi_reduction <add>, %39, %cst_11 [0] : vector<2x128xf32> to vector<128xf32>
    %41 = vector.shape_cast %38 : vector<1x256xf32> to vector<2x128xf32>
    %cst_12 = arith.constant dense<0.000000e+00> : vector<128xf32>
    %42 = vector.multi_reduction <add>, %41, %cst_12 [0] : vector<2x128xf32> to vector<128xf32>
    %43 = vector.shape_cast %40 : vector<128xf32> to vector<1x1x1x128xf32>
    %c0_13 = arith.constant 0 : index
    %c0_14 = arith.constant 0 : index
    %c0_15 = arith.constant 0 : index
    %c0_16 = arith.constant 0 : index
    %44 = vector.load %arg4[%c0_13, %c0_14, %c0_15, %c0_16] : memref<1x1x1x128xf32, #tpu.memory_space<vmem>>, vector<1x1x1x128xf32>
    tpu.vector_store %arg4[%c0_13, %c0_14, %c0_15, %c0_16], %43 {strides = array<i32>} : memref<1x1x1x128xf32, #tpu.memory_space<vmem>>, vector<1x1x1x128xf32>,
    %45 = vector.shape_cast %42 : vector<128xf32> to vector<1x1x1x128xf32>
    %c0_17 = arith.constant 0 : index
    %c0_18 = arith.constant 0 : index
    %c0_19 = arith.constant 0 : index
    %c0_20 = arith.constant 0 : index
    %46 = vector.load %arg5[%c0_17, %c0_18, %c0_19, %c0_20] : memref<1x1x1x128xf32, #tpu.memory_space<vmem>>, vector<1x1x1x128xf32>
    tpu.vector_store %arg5[%c0_17, %c0_18, %c0_19, %c0_20], %45 {strides = array<i32>} : memref<1x1x1x128xf32, #tpu.memory_space<vmem>>, vector<1x1x1x128xf32>,
    return
  }
  func.func @transform_0(%arg0: i32, %arg1: i32) -> (i32, i32, i32) {
    %c0_i32 = arith.constant 0 : i32
    %c0_i32_0 = arith.constant 0 : i32
    return %arg0, %c0_i32, %arg1 : i32, i32, i32
  }
  func.func @transform_1(%arg0: i32, %arg1: i32) -> (i32, i32, i32) {
    %c0_i32 = arith.constant 0 : i32
    %c0_i32_0 = arith.constant 0 : i32
    return %arg0, %c0_i32, %arg1 : i32, i32, i32
  }
  func.func @transform_2(%arg0: i32, %arg1: i32) -> (i32, i32, i32, i32) {
    %c0_i32 = arith.constant 0 : i32
    %c0_i32_0 = arith.constant 0 : i32
    %c0_i32_1 = arith.constant 0 : i32
    return %arg0, %arg1, %c0_i32, %c0_i32_0 : i32, i32, i32, i32
  }
  func.func @transform_3(%arg0: i32, %arg1: i32) -> (i32, i32, i32, i32) {
    %c0_i32 = arith.constant 0 : i32
    %c0_i32_0 = arith.constant 0 : i32
    %c0_i32_1 = arith.constant 0 : i32
    return %arg0, %arg1, %c0_i32, %c0_i32_0 : i32, i32, i32, i32
  }
}

</mosaic_0001>

<llo_original>
// kernel: tpu_custom_call.1
$region0: #{tpu_custom_call.1}
  #allocation0 [shape = 'u32[]', space=smem, size = 0x4, offset = 0x4, fixed_abs, tag = 'smem constant byte address 0x4 - core index']
  #allocation1 [shape = 'u32[72,128]{1,0:T(1,128)}', space=vmem, size = 0x9000, scoped, tag = 'internal scratch']
  %s0 = inlined_call_operand.hbm [shape: f32[2,4,256], index: 0, kind: input, shape index: {}]
  %s1 = inlined_call_operand.hbm [shape: s32[2,1,256], index: 1, kind: input, shape index: {}]
  %s2 = inlined_call_operand.hbm [shape: f32[2,1,1,128], index: 2, kind: output, shape index: {0}]
  %s3 = inlined_call_operand.hbm [shape: f32[2,1,1,128], index: 3, kind: output, shape index: {1}]
  %4 = xla_tuple %s2, %s3
  %s5 = sld [smem:[#allocation0]]
  $region57: #{tpu_custom_call.1} parent=0
    _
  %s7 = ssub.s32 1, %s5
  %s8 = scalar_select 0, %s7, %s5
  $region1: #{tpu_custom_call.1} parent=0
    #allocation2 [shape = 'u8[8192]{0}', space=vmem, size = 0x2000, scoped, tag = 'input window, operand 0']
    #allocation3 [shape = 's32[2]{0}', space=sflag, size = 0x8, scoped, tag = 'scoped memory for tpu_custom_call.1']
    #allocation4 [shape = 's32[2]{0}', space=sflag, size = 0x8, scoped, tag = 'scoped memory for tpu_custom_call.1']
    #allocation5 [shape = 'u8[2048]{0}', space=vmem, size = 0x800, scoped, tag = 'input window, operand 1']
    #allocation6 [shape = 's32[2]{0}', space=sflag, size = 0x8, scoped, tag = 'scoped memory for tpu_custom_call.1']
    #allocation7 [shape = 'u8[1024]{0}', space=vmem, size = 0x400, scoped, tag = 'output window, operand 0']
    #allocation8 [shape = 'u8[1024]{0}', space=vmem, size = 0x400, scoped, tag = 'output window, operand 1']
    #allocation9 [shape = 's32[2]{0}', space=sflag, size = 0x8, scoped, tag = 'scoped memory for tpu_custom_call.1']
    %9 = vsyncpa [#allocation3], 0
    %s10 = scalar_lea.sflag [#allocation3], 1
    %11 = vsyncpa %s10, 0
    %12 = vsyncpa [#allocation6], 0
    %s13 = scalar_lea.sflag [#allocation6], 1
    %14 = vsyncpa %s13, 0
    %15 = vsyncpa [#allocation4], 0
    %s16 = scalar_lea.sflag [#allocation4], 1
    %17 = vsyncpa %s16, 0
    %18 = vsyncpa [#allocation9], 0
    %s19 = scalar_lea.sflag [#allocation9], 1
    %20 = vsyncpa %s19, 0
    loop: start=0, step=1, limit=4
    $region2: #{tpu_custom_call.1} parent=1 // loop_pre_header
      _
    $region3: #{tpu_custom_call.1} parent=1 // loop_header
      %s22 = sphi 0, %s26
      %p23 = scmp.ge.s32.totalorder %s22, 4
      %s29 = sphi 0, %s41
      %s30 = sphi 0, %s37
      %s31 = sphi 0, %s29
      %s32 = sphi 0, %s30
      %s33 = sphi 0, %s31
      %s34 = sphi 0, %s32
      %s46 = sphi 0, %s48
      %s49 = sphi 0, %s46
      %s50 = sphi 0, %s49
      %s66 = sphi 0, %s50
      %s74 = sphi 0, %s76
      %s77 = sphi 0, %s74
      %s78 = sphi 0, %s77
      %s94 = sphi 0, %s78
      %s102 = sphi 0, %s104
      %s105 = sphi 0, %s102
      %s106 = sphi 0, %s105
      %s122 = sphi 0, %s106
      %s130 = sphi 0, %s132
      %s133 = sphi 0, %s130
      %s134 = sphi 0, %s133
      %s150 = sphi 0, %s134
    $region4: #{tpu_custom_call.1} parent=1 // loop_header_branch
      %25 = sbr.rel (%p23) target = $region8
    $region5: #{tpu_custom_call.1} parent=1 // loop_body
      %s27 = ssub.s32 %s22, 1
      %s28 = ssub.s32 %s22, 2
      %s35 = sadd.s32 1, %s30
      %p36 = scmp.ge.s32.totalorder %s35, 1
      %s37 = scalar_select %p36, 0, %s35
      %s38 = sadd.s32 1, %s29
      %s39 = scalar_select %p36, %s38, %s29
      %p40 = scmp.ge.s32.totalorder %s39, 2
      %s41 = scalar_select %p40, 0, %s39
      %s42 = ssub.s32 %s29, %s41
      %s43 = ssub.s32 %s30, %s37
      %s44 = sor.u32 %s42, %s43
      %p45 = scmp.eq.s32.totalorder %s44, 0
      %s47 = sadd.s32 %s46, 1
      %s48 = scalar_select %p45, %s46, %s47
      %p51 = pneg %p45
      %p52 = scmp.eq.s32.totalorder %s22, 1
      %p53 = por %p51, %p52
      %p54 = scmp.ne.s32.totalorder %s46, %s49
      %p55 = scmp.eq.s32.totalorder %s22, 0
      %p56 = por %p54, %p55
      %p57 = scmp.ne.s32.totalorder %s46, %s49
      %p58 = scmp.eq.s32.totalorder %s27, 1
      %p59 = por %p57, %p58
      %p60 = scmp.ne.s32.totalorder %s49, %s50
      %p61 = scmp.eq.s32.totalorder %s27, 0
      %p62 = por %p60, %p61
      %p63 = scmp.ne.s32.totalorder %s49, %s50
      %p64 = scmp.eq.s32.totalorder %s28, 1
      %p65 = por %p63, %p64
      %p67 = scmp.ne.s32.totalorder %s50, %s66
      %p68 = scmp.eq.s32.totalorder %s28, 0
      %p69 = por %p67, %p68
      %s70 = ssub.s32 %s29, %s41
      %s71 = ssub.s32 %s30, %s37
      %s72 = sor.u32 %s70, %s71
      %p73 = scmp.eq.s32.totalorder %s72, 0
      %s75 = sadd.s32 %s74, 1
      %s76 = scalar_select %p73, %s74, %s75
      %p79 = pneg %p73
      %p80 = scmp.eq.s32.totalorder %s22, 1
      %p81 = por %p79, %p80
      %p82 = scmp.ne.s32.totalorder %s74, %s77
      %p83 = scmp.eq.s32.totalorder %s22, 0
      %p84 = por %p82, %p83
      %p85 = scmp.ne.s32.totalorder %s74, %s77
      %p86 = scmp.eq.s32.totalorder %s27, 1
      %p87 = por %p85, %p86
      %p88 = scmp.ne.s32.totalorder %s77, %s78
      %p89 = scmp.eq.s32.totalorder %s27, 0
      %p90 = por %p88, %p89
      %p91 = scmp.ne.s32.totalorder %s77, %s78
      %p92 = scmp.eq.s32.totalorder %s28, 1
      %p93 = por %p91, %p92
      %p95 = scmp.ne.s32.totalorder %s78, %s94
      %p96 = scmp.eq.s32.totalorder %s28, 0
      %p97 = por %p95, %p96
      %s98 = ssub.s32 %s29, %s41
      %s99 = ssub.s32 %s30, %s37
      %s100 = sor.u32 %s98, %s99
      %p101 = scmp.eq.s32.totalorder %s100, 0
      %s103 = sadd.s32 %s102, 1
      %s104 = scalar_select %p101, %s102, %s103
      %p107 = pneg %p101
      %p108 = scmp.eq.s32.totalorder %s22, 1
      %p109 = por %p107, %p108
      %p110 = scmp.ne.s32.totalorder %s102, %s105
      %p111 = scmp.eq.s32.totalorder %s22, 0
      %p112 = por %p110, %p111
      %p113 = scmp.ne.s32.totalorder %s102, %s105
      %p114 = scmp.eq.s32.totalorder %s27, 1
      %p115 = por %p113, %p114
      %p116 = scmp.ne.s32.totalorder %s105, %s106
      %p117 = scmp.eq.s32.totalorder %s27, 0
      %p118 = por %p116, %p117
      %p119 = scmp.ne.s32.totalorder %s105, %s106
      %p120 = scmp.eq.s32.totalorder %s28, 1
      %p121 = por %p119, %p120
      %p123 = scmp.ne.s32.totalorder %s106, %s122
      %p124 = scmp.eq.s32.totalorder %s28, 0
      %p125 = por %p123, %p124
      %s126 = ssub.s32 %s29, %s41
      %s127 = ssub.s32 %s30, %s37
      %s128 = sor.u32 %s126, %s127
      %p129 = scmp.eq.s32.totalorder %s128, 0
      %s131 = sadd.s32 %s130, 1
      %s132 = scalar_select %p129, %s130, %s131
      %p135 = pneg %p129
      %p136 = scmp.eq.s32.totalorder %s22, 1
      %p137 = por %p135, %p136
      %p138 = scmp.ne.s32.totalorder %s130, %s133
      %p139 = scmp.eq.s32.totalorder %s22, 0
      %p140 = por %p138, %p139
      %p141 = scmp.ne.s32.totalorder %s130, %s133
      %p142 = scmp.eq.s32.totalorder %s27, 1
      %p143 = por %p141, %p142
      %p144 = scmp.ne.s32.totalorder %s133, %s134
      %p145 = scmp.eq.s32.totalorder %s27, 0
      %p146 = por %p144, %p145
      %p147 = scmp.ne.s32.totalorder %s133, %s134
      %p148 = scmp.eq.s32.totalorder %s28, 1
      %p149 = por %p147, %p148
      %p151 = scmp.ne.s32.totalorder %s134, %s150
      %p152 = scmp.eq.s32.totalorder %s28, 0
      %p153 = por %p151, %p152
      %p154 = scmp.le.s32.totalorder 1, %s22
      %p155 = scmp.lt.s32.totalorder %s22, 3
      %p156 = pnand %p154, %p155
      %p157 = pneg %p156
      // Predicated region
      $region9: #{tpu_custom_call.1} parent=5 // pred_check
        _
      $region10: #{tpu_custom_call.1} parent=5 // pred_check_branch
        %159 = sbr.rel (%p156) target = $region12
      $region11: #{tpu_custom_call.1} parent=5 // pred_region
        %s160 = ssub.s32 %s22, 1
      $region12: #{tpu_custom_call.1} parent=5 // pred_fallthru
        _
      %p161 = scmp.lt.s32.totalorder %s22, 2
      // Predicated region
      $region13: #{tpu_custom_call.1} parent=5 // pred_check
        %p162 = pneg %p161
      $region14: #{tpu_custom_call.1} parent=5 // pred_check_branch
        %164 = sbr.rel (%p162) target = $region16
      $region15: #{tpu_custom_call.1} parent=5 // pred_region
        // Predicated region
        $region17: #{tpu_custom_call.1} parent=15 // pred_check
          %p165 = pneg %p56
        $region18: #{tpu_custom_call.1} parent=15 // pred_check_branch
          %167 = sbr.rel (%p165) target = $region20
        $region19: #{tpu_custom_call.1} parent=15 // pred_region
          %s168 = sand.u32 %s46, 1
          %s169 = scalar_lea.sflag [#allocation3], %s168
          %s170 = sand.u32 %s46, 1
          %s171 = smul.addr %s170, 8
          %s172 = scalar_lea.vmem [#allocation2], %s171
          %s173 = smul.u32 2, %s30
          %175 = vsyncadd %s169, 0
          %s176 = smul.addr %s29, 2
          %s177 = sadd.s32 %s173, %s176
          %s178 = smul.addr %s177, 4
          %s179 = scalar_lea.hbm %s0, %s178
          %s181 = sshll.u32 %s179, 4
          %s182 = int_to_ptr.hbm [resolvable:$true] %s181
          %s183 = sshll.u32 %s172, 4
          %s184 = int_to_ptr.vmem [resolvable:$true] %s183
          %186 = dma.hbm_to_vmem [thread:$0]  %s182, 128, %s184, %s169
        $region20: #{tpu_custom_call.1} parent=15 // pred_fallthru
          _
        // Predicated region
        $region21: #{tpu_custom_call.1} parent=15 // pred_check
          %p187 = pneg %p84
        $region22: #{tpu_custom_call.1} parent=15 // pred_check_branch
          %189 = sbr.rel (%p187) target = $region24
        $region23: #{tpu_custom_call.1} parent=15 // pred_region
          %s190 = sand.u32 %s74, 1
          %s191 = scalar_lea.sflag [#allocation6], %s190
          %s192 = sand.u32 %s74, 1
          %s193 = smul.addr %s192, 2
          %s194 = scalar_lea.vmem [#allocation5], %s193
          %s195 = smul.u32 2, %s30
          %197 = vsyncadd %s191, 0
          %s198 = smul.addr %s29, 2
          %s199 = sadd.s32 %s195, %s198
          %s200 = scalar_lea.hbm %s1, %s199
          %s202 = sshll.u32 %s200, 4
          %s203 = int_to_ptr.hbm [resolvable:$true] %s202
          %s204 = sshll.u32 %s194, 4
          %s205 = int_to_ptr.vmem [resolvable:$true] %s204
          %207 = dma.hbm_to_vmem [thread:$0]  %s203, 32, %s205, %s191
        $region24: #{tpu_custom_call.1} parent=15 // pred_fallthru
          _
      $region16: #{tpu_custom_call.1} parent=5 // pred_fallthru
        _
      %p208 = scmp.le.s32.totalorder 1, %s22
      %p209 = scmp.lt.s32.totalorder %s22, 3
      %p210 = pnand %p208, %p209
      %p211 = pneg %p210
      // Predicated region
      $region25: #{tpu_custom_call.1} parent=5 // pred_check
        _
      $region26: #{tpu_custom_call.1} parent=5 // pred_check_branch
        %213 = sbr.rel (%p210) target = $region28
      $region27: #{tpu_custom_call.1} parent=5 // pred_region
        %s214 = ssub.s32 %s22, 1
        %s215 = sand.u32 %s49, 1
        %s216 = scalar_lea.sflag [#allocation3], %s215
        %s217 = sand.u32 %s49, 1
        %s218 = smul.addr %s217, 8
        %s219 = scalar_lea.vmem [#allocation2], %s218
        // Predicated region
        $region29: #{tpu_custom_call.1} parent=27 // pred_check
          %p220 = pneg %p62
        $region30: #{tpu_custom_call.1} parent=27 // pred_check_branch
          %222 = sbr.rel (%p220) target = $region32
        $region31: #{tpu_custom_call.1} parent=27 // pred_region
          %224 = dma.done %s216, 128
        $region32: #{tpu_custom_call.1} parent=27 // pred_fallthru
          _
        %s225 = sand.u32 %s77, 1
        %s226 = scalar_lea.sflag [#allocation6], %s225
        %s227 = sand.u32 %s77, 1
        %s228 = smul.addr %s227, 2
        %s229 = scalar_lea.vmem [#allocation5], %s228
        // Predicated region
        $region33: #{tpu_custom_call.1} parent=27 // pred_check
          %p230 = pneg %p90
        $region34: #{tpu_custom_call.1} parent=27 // pred_check_branch
          %232 = sbr.rel (%p230) target = $region36
        $region35: #{tpu_custom_call.1} parent=27 // pred_region
          %234 = dma.done %s226, 32
        $region36: #{tpu_custom_call.1} parent=27 // pred_fallthru
          _
        %s235 = sand.u32 %s49, 1
        %s236 = scalar_lea.sflag [#allocation3], %s235
        %s237 = sand.u32 %s49, 1
        %s238 = smul.addr %s237, 8
        %s239 = scalar_lea.vmem [#allocation2], %s238
        %p240 = pneg %p62
        %p241 = pneg %p59
        %s242 = sand.u32 %s77, 1
        %s243 = scalar_lea.sflag [#allocation6], %s242
        %s244 = sand.u32 %s77, 1
        %s245 = smul.addr %s244, 2
        %s246 = scalar_lea.vmem [#allocation5], %s245
        %p247 = pneg %p90
        %p248 = pneg %p87
        %p249 = pneg %p118
        %p250 = pneg %p115
        %s251 = sand.u32 %s105, 1
        %s252 = scalar_lea.sflag [#allocation4], %s251
        %s253 = sand.u32 %s105, 1
        %s254 = scalar_lea.vmem [#allocation7], %s253
        %p255 = pneg %p146
        %p256 = pneg %p143
        %s257 = sand.u32 %s133, 1
        %s258 = scalar_lea.sflag [#allocation9], %s257
        %s259 = sand.u32 %s133, 1
        %s260 = scalar_lea.vmem [#allocation8], %s259
        %s261 = smul.u32 2, %s32
        %s262 = smul.u32 2, %s32
        %v263 = vld [vmem:[%s219] sm:$0xff]
        %v264 = vld [vmem:[%s229] sm:$0x3]
        %v265 = vlaneseq
        %v266 = vshrl.u32 %v265, 7
        %v267 = vperm.slane %v264, 0
        %v268 = vperm.slane %v264, 1
        %vm269 = vcmp.eq.s32.totalorder %v266, %v267
        %vm270 = vcmp.eq.s32.totalorder %v266, %v268
        %v271 = vsel %vm269, 1, 0
        %v272 = vsel %vm270, 1, 0
        %v273 = vcvt.s32.f32 %v271
        %v274 = vcvt.s32.f32 %v272
        %276 = vst [vmem:[#allocation1] ss:$2 sm:$0xff] %v263
        %v277 = vld.sshfl [vmem:[#allocation1] sm:$0xff pattern:$0x75316420]
        %v278 = vld.sshfl [vmem:[#allocation1 + $0x8] sm:$0xff pattern:$0x75316420]
        %vm281 = vcmask 1043456
        %v282 = vsel %vm281, %v277, -inf
        %v283 = vrot.slane %v282, 4
        %v284 = vmax.f32 %v282, %v283
        %v285 = vrot.slane %v284, 2
        %v286 = vmax.f32 %v284, %v285
        %v287 = vrot.slane %v286, 1
        %v288 = vmax.f32 %v286, %v287
        %v289 = vsel %vm281, %v278, -inf
        %v290 = vrot.slane %v289, 4
        %v291 = vmax.f32 %v289, %v290
        %v292 = vrot.slane %v291, 2
        %v293 = vmax.f32 %v291, %v292
        %v294 = vrot.slane %v293, 1
        %v295 = vmax.f32 %v293, %v294
        %v298 = vrot.slane %v295, 4
        %v299 = vsel %vm281, %v288, %v298
        %v301 = vsub.f32 %v263, %v299
        %v302 = vmul.f32 %v301, 1.442695
        %v303 = vpow.pop %v302
        %305 = vst [vmem:[#allocation1] ss:$2 sm:$0xff] %v303
        %v306 = vld.sshfl [vmem:[#allocation1] sm:$0xff pattern:$0x75316420]
        %v307 = vld.sshfl [vmem:[#allocation1 + $0x8] sm:$0xff pattern:$0x75316420]
        %v310 = vsel %vm281, %v306, 0.0
        %v311 = vrot.slane %v310, 4
        %v312 = vadd.f32 %v310, %v311
        %v313 = vrot.slane %v312, 2
        %v314 = vadd.f32 %v312, %v313
        %v315 = vrot.slane %v314, 1
        %v316 = vadd.f32 %v314, %v315
        %v317 = vsel %vm281, %v307, 0.0
        %v318 = vrot.slane %v317, 4
        %v319 = vadd.f32 %v317, %v318
        %v320 = vrot.slane %v319, 2
        %v321 = vadd.f32 %v319, %v320
        %v322 = vrot.slane %v321, 1
        %v323 = vadd.f32 %v321, %v322
        %v324 = vlog2.pop %v316
        %v325 = vmul.f32 %v324, 0.6931472
        %v326 = vlog2.pop %v323
        %v327 = vmul.f32 %v326, 0.6931472
        %328 = vst [vmem:[#allocation1] ss:$2 sm:$0xff] %v263
        %v329 = vld.sshfl [vmem:[#allocation1] sm:$0xff pattern:$0x75316420]
        %v330 = vld.sshfl [vmem:[#allocation1 + $0x8] sm:$0xff pattern:$0x75316420]
        %v333 = vmul.f32 %v273, %v329
        %v334 = vmul.f32 %v274, %v330
        %v335 = vsel %vm281, %v333, 0.0
        %v336 = vrot.slane %v335, 4
        %v337 = vadd.f32 %v335, %v336
        %v338 = vrot.slane %v337, 2
        %v339 = vadd.f32 %v337, %v338
        %v340 = vrot.slane %v339, 1
        %v341 = vadd.f32 %v339, %v340
        %v342 = vsel %vm281, %v334, 0.0
        %v343 = vrot.slane %v342, 4
        %v344 = vadd.f32 %v342, %v343
        %v345 = vrot.slane %v344, 2
        %v346 = vadd.f32 %v344, %v345
        %v347 = vrot.slane %v346, 1
        %v348 = vadd.f32 %v346, %v347
        %v349 = vsub.f32 %v341, %v288
        %v350 = vsub.f32 %v348, %v295
        %v351 = vsub.f32 %v349, %v325
        %v352 = vsub.f32 %v350, %v327
        %v353 = vmul.f32 %v351, 1.442695
        %v354 = vpow.pop %v353
        %v355 = vmul.f32 %v352, 1.442695
        %v356 = vpow.pop %v355
        %v357 = vsub.f32 1.0, %v354
        %v358 = vsub.f32 1.0, %v356
        %v359 = vmul.f32 %v357, %v357
        %v360 = vmul.f32 %v358, %v358
        %v361 = vsub.f32 0.0, %v359
        %v362 = vsub.f32 0.0, %v360
        %v363 = vmul.f32 %v361, %v351
        %v364 = vmul.f32 %v362, %v352
        %s365 = smul.u32 %s32, 256
        %v366 = vlaneseq
        %v367 = vand.u32 %v366, 127
        %v368 = vadd.s32 %v367, 128
        %v369 = vstv %s365
        %v370 = vadd.s32 %v369, %v367
        %v371 = vadd.s32 %v369, %v368
        %vm372 = vcmp.lt.s32.totalorder %v370, 256
        %vm373 = vcmp.lt.s32.totalorder %v371, 256
        %v374 = vsel %vm372, %v363, 0.0
        %v375 = vsel %vm373, %v364, 0.0
        %v376 = vsel %vm372, 1, 0
        %v377 = vsel %vm373, 1, 0
        %v378 = vcvt.s32.f32 %v376
        %v379 = vcvt.s32.f32 %v377
        %v382 = vrot.slane %v375, 4
        %v383 = vsel %vm281, %v374, %v382
        %v386 = vunpack.c.l.s4 1935823168
        %v387 = vunpack.c.0.s8 %v386
        %v388 = vperm.slane %v383, %v387
        %vm389 = vcmask 1041408
        %v390 = vsel %vm389, %v388, 0.0
        %v391 = vrot.slane %v390, 4
        %v392 = vadd.f32 %v390, %v391
        %v393 = vrot.slane %v392, 2
        %v394 = vadd.f32 %v392, %v393
        %v395 = vrot.slane %v394, 1
        %v396 = vadd.f32 %v394, %v395
        %v399 = vrot.slane %v379, 4
        %v400 = vsel %vm281, %v378, %v399
        %v403 = vunpack.c.l.s4 1935823168
        %v404 = vunpack.c.0.s8 %v403
        %v405 = vperm.slane %v400, %v404
        %v406 = vsel %vm389, %v405, 0.0
        %v407 = vrot.slane %v406, 4
        %v408 = vadd.f32 %v406, %v407
        %v409 = vrot.slane %v408, 2
        %v410 = vadd.f32 %v408, %v409
        %v411 = vrot.slane %v410, 1
        %v412 = vadd.f32 %v410, %v411
        %413 = vst [vmem:[%s254] sm:$0x1] %v396
        %414 = vst [vmem:[%s260] sm:$0x1] %v412
        %s415 = sand.u32 %s105, 1
        %s416 = scalar_lea.sflag [#allocation4], %s415
        %s417 = sand.u32 %s105, 1
        %s418 = scalar_lea.vmem [#allocation7], %s417
        %s419 = sand.u32 %s133, 1
        %s420 = scalar_lea.sflag [#allocation9], %s419
        %s421 = sand.u32 %s133, 1
        %s422 = scalar_lea.vmem [#allocation8], %s421
        // Predicated region
        $region37: #{tpu_custom_call.1} parent=27 // pred_check
          %p423 = pneg %p115
        $region38: #{tpu_custom_call.1} parent=27 // pred_check_branch
          %425 = sbr.rel (%p423) target = $region40
        $region39: #{tpu_custom_call.1} parent=27 // pred_region
          %427 = vsyncadd %s416, 0
          %s428 = sadd.s32 %s32, %s31
          %s429 = scalar_lea.hbm %s2, %s428
          %s431 = sshll.u32 %s418, 4
          %s432 = int_to_ptr.vmem [resolvable:$true] %s431
          %s433 = sshll.u32 %s429, 4
          %s434 = int_to_ptr.hbm [resolvable:$true] %s433
          %436 = dma.vmem_to_hbm [thread:$0]  %s432, 16, %s434, %s416
        $region40: #{tpu_custom_call.1} parent=27 // pred_fallthru
          _
        // Predicated region
        $region41: #{tpu_custom_call.1} parent=27 // pred_check
          %p437 = pneg %p143
        $region42: #{tpu_custom_call.1} parent=27 // pred_check_branch
          %439 = sbr.rel (%p437) target = $region44
        $region43: #{tpu_custom_call.1} parent=27 // pred_region
          %441 = vsyncadd %s420, 0
          %s442 = sadd.s32 %s32, %s31
          %s443 = scalar_lea.hbm %s3, %s442
          %s445 = sshll.u32 %s422, 4
          %s446 = int_to_ptr.vmem [resolvable:$true] %s445
          %s447 = sshll.u32 %s443, 4
          %s448 = int_to_ptr.hbm [resolvable:$true] %s447
          %450 = dma.vmem_to_hbm [thread:$0]  %s446, 16, %s448, %s420
        $region44: #{tpu_custom_call.1} parent=27 // pred_fallthru
          _
      $region28: #{tpu_custom_call.1} parent=5 // pred_fallthru
        _
      %p451 = scmp.le.s32.totalorder 2, %s22
      // Predicated region
      $region45: #{tpu_custom_call.1} parent=5 // pred_check
        %p452 = pneg %p451
      $region46: #{tpu_custom_call.1} parent=5 // pred_check_branch
        %454 = sbr.rel (%p452) target = $region48
      $region47: #{tpu_custom_call.1} parent=5 // pred_region
        %s455 = ssub.s32 %s22, 2
        // Predicated region
        $region49: #{tpu_custom_call.1} parent=47 // pred_check
          %p456 = pneg %p121
        $region50: #{tpu_custom_call.1} parent=47 // pred_check_branch
          %458 = sbr.rel (%p456) target = $region52
        $region51: #{tpu_custom_call.1} parent=47 // pred_region
          %s459 = sand.u32 %s106, 1
          %s460 = scalar_lea.sflag [#allocation4], %s459
          %s461 = sand.u32 %s106, 1
          %s462 = scalar_lea.vmem [#allocation7], %s461
          %464 = dma.done %s460, 16
        $region52: #{tpu_custom_call.1} parent=47 // pred_fallthru
          _
        // Predicated region
        $region53: #{tpu_custom_call.1} parent=47 // pred_check
          %p465 = pneg %p149
        $region54: #{tpu_custom_call.1} parent=47 // pred_check_branch
          %467 = sbr.rel (%p465) target = $region56
        $region55: #{tpu_custom_call.1} parent=47 // pred_region
          %s468 = sand.u32 %s134, 1
          %s469 = scalar_lea.sflag [#allocation9], %s468
          %s470 = sand.u32 %s134, 1
          %s471 = scalar_lea.vmem [#allocation8], %s470
          %473 = dma.done %s469, 16
        $region56: #{tpu_custom_call.1} parent=47 // pred_fallthru
          _
      $region48: #{tpu_custom_call.1} parent=5 // pred_fallthru
        _
    $region6: #{tpu_custom_call.1} parent=1 // loop_footer
      %s26 = sadd.s32 1, %s22
    $region7: #{tpu_custom_call.1} parent=1 // loop_footer_branch
      %21 = sbr.rel target = $region3
    $region8: #{tpu_custom_call.1} parent=1 // loop_exit
      _
    %474 = vsyncpa [#allocation3], 1
    %s475 = scalar_lea.sflag [#allocation3], 1
    %476 = vsyncpa %s475, 1
    %477 = vsyncpa [#allocation6], 1
    %s478 = scalar_lea.sflag [#allocation6], 1
    %479 = vsyncpa %s478, 1
    %480 = vsyncpa [#allocation4], 1
    %s481 = scalar_lea.sflag [#allocation4], 1
    %482 = vsyncpa %s481, 1
    %483 = vsyncpa [#allocation9], 1
    %s484 = scalar_lea.sflag [#allocation9], 1
    %485 = vsyncpa %s484, 1

</llo_original>
